<compile_context>
chip_gen: v7x
topology: tpu7x:2x2x1
jax: 0.10.0
libtpu: 0.0.40
codegen_flags: <defaults>
</compile_context>

<pallas_src>
import jax
import jax.numpy as jnp
from jax.experimental import pallas as pl
from jax.experimental.pallas import tpu as pltpu

LEAKY_SLOPE = 0.01   # nn.LeakyReLU() default negative_slope
LANE = 128           # lane-dense output width


def mlp_softmax_kernel(x_ref, w1_ref, b1_ref, w2_ref, b2_ref, o_ref):
    # x_ref: (1, B, in); weights already transposed in the wrapper -> no in-kernel .T
    x = x_ref[0]                                                        # (B, in)
    h = jnp.dot(x, w1_ref[...], preferred_element_type=jnp.float32) + b1_ref[...]
    h = jnp.maximum(h, LEAKY_SLOPE * h)                                 # LeakyReLU
    logits = jnp.dot(h, w2_ref[...], preferred_element_type=jnp.float32) + b2_ref[...]
    # Softmax over dim=0 (the batch axis), matching nn.Softmax(dim=0).
    m = jnp.max(logits, axis=0, keepdims=True)
    e = jnp.exp(logits - m)
    denom = jnp.sum(e, axis=0, keepdims=True)
    r = pl.reciprocal(denom, approx=True)                               # EUP vrcp
    r = r * (2.0 - denom * r)                                           # 1 Newton step -> fp32 acc
    o_ref[0] = (e * r).astype(o_ref.dtype)                              # (B, out_pad)


def mlp_softmax_batched(xs, w1, b1, w2, b2):
    """xs: (P, B, in) stacked independent problems; the module is applied per problem."""
    P, B, in_size = xs.shape
    hidden = w1.shape[0]
    out_size = w2.shape[0]
    out_pad = max(LANE, pl.cdiv(out_size, LANE) * LANE)

    # One-time layout prep (plain XLA ops outside the kernel; free for constant weights).
    w1t = w1.T                                               # (in, hidden)
    b1r = b1.reshape(1, hidden)
    w2t_p = jnp.zeros((hidden, out_pad), jnp.float32).at[:, :out_size].set(w2.T)
    b2r_p = jnp.zeros((1, out_pad), jnp.float32).at[:, :out_size].set(b2)

    flops = 2 * P * B * (in_size * hidden + hidden * out_pad)
    transcendentals = P * (B * out_pad + out_pad)            # exp + reciprocal
    bytes_accessed = 4 * (xs.size + w1t.size + b1r.size + w2t_p.size + b2r_p.size
                          + P * B * out_pad)

    out = pl.pallas_call(
        mlp_softmax_kernel,
        out_shape=jax.ShapeDtypeStruct((P, B, out_pad), jnp.float32),
        grid_spec=pltpu.PrefetchScalarGridSpec(
            num_scalar_prefetch=0,
            grid=(P,),
            in_specs=[
                pl.BlockSpec((1, B, in_size), lambda p: (p, 0, 0)),
                # weights/biases: constant block index -> VMEM-resident across the grid
                pl.BlockSpec((in_size, hidden), lambda p: (0, 0)),
                pl.BlockSpec((1, hidden), lambda p: (0, 0)),
                pl.BlockSpec((hidden, out_pad), lambda p: (0, 0)),
                pl.BlockSpec((1, out_pad), lambda p: (0, 0)),
            ],
            out_specs=pl.BlockSpec((1, B, out_pad), lambda p: (p, 0, 0)),
        ),
        compiler_params=pltpu.CompilerParams(
            dimension_semantics=("parallel",)),   # v7x: split problems over both TCs
        cost_estimate=pl.CostEstimate(
            flops=flops, transcendentals=transcendentals, bytes_accessed=bytes_accessed),
    )(xs, w1t, b1r, w2t_p, b2r_p)
    return out[:, :, :out_size]


def mlp_softmax(x, w1, b1, w2, b2):
    """Single (B, in) input -> (B, out): exactly the PyTorch module forward."""
    return mlp_softmax_batched(x[None], w1, b1, w2, b2)[0]


if __name__ == "__main__":
    input_size, hidden_size, output_size = 32, 64, 16
    batch = 8
    num_problems = 4

    key = jax.random.PRNGKey(0)
    kx, k1, k2, k3, k4 = jax.random.split(key, 5)

    xs = jax.random.normal(kx, (num_problems, batch, input_size), dtype=jnp.float32)
    # PyTorch-layout parameters: (out_features, in_features)
    w1 = jax.random.normal(k1, (hidden_size, input_size), dtype=jnp.float32) * 0.1
    b1 = jax.random.normal(k2, (hidden_size,), dtype=jnp.float32) * 0.1
    w2 = jax.random.normal(k3, (output_size, hidden_size), dtype=jnp.float32) * 0.1
    b2 = jax.random.normal(k4, (output_size,), dtype=jnp.float32) * 0.1

    # Pure-JAX reference of the module forward.
    def ref_forward(x):
        h = x @ w1.T + b1
        h = jnp.where(h >= 0, h, LEAKY_SLOPE * h)
        logits = h @ w2.T + b2
        return jax.nn.softmax(logits, axis=0)

    # 1) Single-problem path (module semantics, softmax over dim=0 of (B, out)).
    out1 = jax.block_until_ready(mlp_softmax(xs[0], w1, b1, w2, b2))
    ref1 = ref_forward(xs[0])
    assert out1.shape == (batch, output_size)
    assert jnp.allclose(out1, ref1, atol=1e-5, rtol=1e-5)

    # 2) Batched path: many independent instances, one pallas_call, grid=(P,).
    out_b = jax.block_until_ready(mlp_softmax_batched(xs, w1, b1, w2, b2))
    ref_b = jax.vmap(ref_forward)(xs)
    assert out_b.shape == (num_problems, batch, output_size)
    assert jnp.allclose(out_b, ref_b, atol=1e-5, rtol=1e-5)

    print("KERNEL_OK")
</pallas_src>

<mosaic_0001>
module attributes {stable_mosaic.version = 11 : i64} {
  func.func @mlp_softmax_kernel(%arg0: i32, %arg1: memref<1x8x32xf32, #tpu.memory_space<vmem>>, %arg2: memref<32x64xf32, #tpu.memory_space<vmem>>, %arg3: memref<1x64xf32, #tpu.memory_space<vmem>>, %arg4: memref<64x128xf32, #tpu.memory_space<vmem>>, %arg5: memref<1x128xf32, #tpu.memory_space<vmem>>, %arg6: memref<1x8x128xf32, #tpu.memory_space<vmem>>) attributes {dimension_semantics = [#tpu.dimension_semantics<parallel>], iteration_bounds = array<i64: 1>, scalar_prefetch = 0 : i64, scratch_operands = 0 : i64, tpu.core_type = #tpu.core_type<tc>, window_params = [{transform_indices = @transform_0, window_bounds = array<i64: 1, 8, 32>}, {pipeline_mode = #tpu.pipeline_mode<synchronous>, transform_indices = @transform_1, window_bounds = array<i64: 32, 64>}, {pipeline_mode = #tpu.pipeline_mode<synchronous>, transform_indices = @transform_2, window_bounds = array<i64: 1, 64>}, {pipeline_mode = #tpu.pipeline_mode<synchronous>, transform_indices = @transform_3, window_bounds = array<i64: 64, 128>}, {pipeline_mode = #tpu.pipeline_mode<synchronous>, transform_indices = @transform_4, window_bounds = array<i64: 1, 128>}, {transform_indices = @transform_5, window_bounds = array<i64: 1, 8, 128>}]} {
    %c0 = arith.constant 0 : index
    %c0_0 = arith.constant 0 : index
    %c0_1 = arith.constant 0 : index
    %0 = vector.load %arg1[%c0, %c0_0, %c0_1] : memref<1x8x32xf32, #tpu.memory_space<vmem>>, vector<1x8x32xf32>
    %1 = vector.shape_cast %0 : vector<1x8x32xf32> to vector<8x32xf32>
    %c0_2 = arith.constant 0 : index
    %c0_3 = arith.constant 0 : index
    %2 = vector.load %arg2[%c0_2, %c0_3] : memref<32x64xf32, #tpu.memory_space<vmem>>, vector<32x64xf32>
    %cst = arith.constant dense<0.000000e+00> : vector<8x64xf32>
    %3 = tpu.matmul %1, %2, %cst {dimension_numbers = #tpu.dot_dimension_numbers<[1], [0], [0], [1], [0, 0, 1, 1], [], []>} : vector<8x32xf32>, vector<32x64xf32>, vector<8x64xf32> -> vector<8x64xf32>
    %c0_4 = arith.constant 0 : index
    %c0_5 = arith.constant 0 : index
    %4 = vector.load %arg3[%c0_4, %c0_5] : memref<1x64xf32, #tpu.memory_space<vmem>>, vector<1x64xf32>
    %5 = vector.broadcast %4 : vector<1x64xf32> to vector<8x64xf32>
    %6 = arith.addf %3, %5 : vector<8x64xf32>
    %cst_6 = arith.constant 0.00999999977 : f32
    %7 = vector.broadcast %cst_6 : f32 to vector<8x64xf32>
    %8 = arith.mulf %7, %6 : vector<8x64xf32>
    %9 = arith.maximumf %6, %8 : vector<8x64xf32>
    %c0_7 = arith.constant 0 : index
    %c0_8 = arith.constant 0 : index
    %10 = vector.load %arg4[%c0_7, %c0_8] : memref<64x128xf32, #tpu.memory_space<vmem>>, vector<64x128xf32>
    %cst_9 = arith.constant dense<0.000000e+00> : vector<8x128xf32>
    %11 = tpu.matmul %9, %10, %cst_9 {dimension_numbers = #tpu.dot_dimension_numbers<[1], [0], [0], [1], [0, 0, 1, 1], [], []>} : vector<8x64xf32>, vector<64x128xf32>, vector<8x128xf32> -> vector<8x128xf32>
    %c0_10 = arith.constant 0 : index
    %c0_11 = arith.constant 0 : index
    %12 = vector.load %arg5[%c0_10, %c0_11] : memref<1x128xf32, #tpu.memory_space<vmem>>, vector<1x128xf32>
    %13 = vector.broadcast %12 : vector<1x128xf32> to vector<8x128xf32>
    %14 = arith.addf %11, %13 : vector<8x128xf32>
    %cst_12 = arith.constant dense<0xFF800000> : vector<128xf32>
    %15 = vector.multi_reduction <maximumf>, %14, %cst_12 [0] : vector<8x128xf32> to vector<128xf32>
    %16 = vector.shape_cast %15 : vector<128xf32> to vector<1x128xf32>
    %17 = vector.broadcast %16 : vector<1x128xf32> to vector<8x128xf32>
    %18 = arith.subf %14, %17 : vector<8x128xf32>
    %19 = math.exp %18 : vector<8x128xf32>
    %cst_13 = arith.constant dense<0.000000e+00> : vector<128xf32>
    %20 = vector.multi_reduction <add>, %19, %cst_13 [0] : vector<8x128xf32> to vector<128xf32>
    %21 = vector.shape_cast %20 : vector<128xf32> to vector<1x128xf32>
    %22 = tpu.reciprocal %21 {approx = true} : vector<1x128xf32> -> vector<1x128xf32>
    %23 = arith.mulf %21, %22 : vector<1x128xf32>
    %cst_14 = arith.constant 2.000000e+00 : f32
    %24 = vector.broadcast %cst_14 : f32 to vector<1x128xf32>
    %25 = arith.subf %24, %23 : vector<1x128xf32>
    %26 = arith.mulf %22, %25 : vector<1x128xf32>
    %27 = vector.broadcast %26 : vector<1x128xf32> to vector<8x128xf32>
    %28 = arith.mulf %19, %27 : vector<8x128xf32>
    %c0_15 = arith.constant 0 : index
    %c0_16 = arith.constant 0 : index
    %c0_17 = arith.constant 0 : index
    %29 = vector.load %arg6[%c0_15, %c0_16, %c0_17] : memref<1x8x128xf32, #tpu.memory_space<vmem>>, vector<1x8x128xf32>
    %30 = vector.shape_cast %29 : vector<1x8x128xf32> to vector<8x128xf32>
    %31 = vector.shape_cast %28 : vector<8x128xf32> to vector<1x8x128xf32>
    tpu.vector_store %arg6[%c0_15, %c0_16, %c0_17], %31 {strides = array<i32>} : memref<1x8x128xf32, #tpu.memory_space<vmem>>, vector<1x8x128xf32>,
    return
  }
  func.func @transform_0(%arg0: i32) -> (i32, i32, i32) {
    %c0_i32 = arith.constant 0 : i32
    %c0_i32_0 = arith.constant 0 : i32
    %c0_i32_1 = arith.constant 0 : i32
    return %arg0, %c0_i32, %c0_i32_0 : i32, i32, i32
  }
  func.func @transform_1(%arg0: i32) -> (i32, i32) {
    %c0_i32 = arith.constant 0 : i32
    %c0_i32_0 = arith.constant 0 : i32
    %c0_i32_1 = arith.constant 0 : i32
    return %c0_i32, %c0_i32_0 : i32, i32
  }
  func.func @transform_2(%arg0: i32) -> (i32, i32) {
    %c0_i32 = arith.constant 0 : i32
    %c0_i32_0 = arith.constant 0 : i32
    %c0_i32_1 = arith.constant 0 : i32
    return %c0_i32, %c0_i32_0 : i32, i32
  }
  func.func @transform_3(%arg0: i32) -> (i32, i32) {
    %c0_i32 = arith.constant 0 : i32
    %c0_i32_0 = arith.constant 0 : i32
    %c0_i32_1 = arith.constant 0 : i32
    return %c0_i32, %c0_i32_0 : i32, i32
  }
  func.func @transform_4(%arg0: i32) -> (i32, i32) {
    %c0_i32 = arith.constant 0 : i32
    %c0_i32_0 = arith.constant 0 : i32
    %c0_i32_1 = arith.constant 0 : i32
    return %c0_i32, %c0_i32_0 : i32, i32
  }
  func.func @transform_5(%arg0: i32) -> (i32, i32, i32) {
    %c0_i32 = arith.constant 0 : i32
    %c0_i32_0 = arith.constant 0 : i32
    %c0_i32_1 = arith.constant 0 : i32
    return %arg0, %c0_i32, %c0_i32_0 : i32, i32, i32
  }
}

</mosaic_0001>

<llo_original>
// kernel: tpu_custom_call.1
$region0: #{tpu_custom_call.1}
  #allocation0 [shape = 'u32[]', space=smem, size = 0x4, offset = 0x4, fixed_abs, tag = 'smem constant byte address 0x4 - core index']
  #allocation1 [shape = 'u32[144,128]{1,0:T(1,128)}', space=vmem, size = 0x12000, scoped, tag = 'internal scratch']
  %s0 = inlined_call_operand.hbm [shape: f32[1,8,32], index: 0, kind: input, shape index: {}]
  %s1 = inlined_call_operand.hbm [shape: f32[32,64], index: 1, kind: input, shape index: {}]
  %s2 = inlined_call_operand.vmem [shape: f32[1,64], index: 2, kind: input, shape index: {}]
  %s3 = inlined_call_operand.hbm [shape: f32[64,128], index: 3, kind: input, shape index: {}]
  %s4 = inlined_call_operand.vmem [shape: f32[1,128], index: 4, kind: input, shape index: {}]
  %s5 = inlined_call_operand.hbm [shape: f32[1,8,128], index: 5, kind: output, shape index: {}]
  %s6 = sld [smem:[#allocation0]]
  $region42: #{tpu_custom_call.1} parent=0
    _
  %s8 = ssub.s32 1, %s6
  %s9 = scalar_select 0, %s8, %s6
  $region1: #{tpu_custom_call.1} parent=0
    #allocation2 [shape = 'u8[4096]{0}', space=vmem, size = 0x1000, scoped, tag = 'input window, operand 0, single buffered']
    #allocation3 [shape = 's32[1]{0}', space=sflag, size = 0x4, scoped, tag = 'scoped memory for tpu_custom_call.1']
    #allocation4 [shape = 's32[1]{0}', space=sflag, size = 0x4, scoped, tag = 'scoped memory for tpu_custom_call.1']
    #allocation5 [shape = 'u8[16384]{0}', space=vmem, size = 0x4000, scoped, tag = 'input window, operand 1, single buffered']
    #allocation6 [shape = 's32[1]{0}', space=sflag, size = 0x4, scoped, tag = 'scoped memory for tpu_custom_call.1']
    #allocation7 [shape = 'u8[32768]{0}', space=vmem, size = 0x8000, scoped, tag = 'input window, operand 3, single buffered']
    #allocation8 [shape = 'u8[4096]{0}', space=vmem, size = 0x1000, scoped, tag = 'output window, operand 0, single buffered']
    %10 = vsyncpa [#allocation3], 0
    %11 = vsyncpa [#allocation6], 0
    %12 = vsyncpa [#allocation4], 0
    // Predicated region
    $region2: #{tpu_custom_call.1} parent=1 // pred_check
      _
    $region3: #{tpu_custom_call.1} parent=1 // pred_check_branch
      %14 = sbr.rel (0) target = $region5
    $region4: #{tpu_custom_call.1} parent=1 // pred_region
      %s16 = ssub.s32 128, 128
      %17 = vsyncadd [#allocation3], %s16
      %s19 = sshll.u32 [#allocation2], 4
      %s20 = int_to_ptr.vmem [resolvable:$true] %s19
      %22 = dma.hbm_to_vmem [thread:$0]  %s0, 128, %s20, [#allocation3]
    $region5: #{tpu_custom_call.1} parent=1 // pred_fallthru
      _
    // Predicated region
    $region6: #{tpu_custom_call.1} parent=1 // pred_check
      _
    $region7: #{tpu_custom_call.1} parent=1 // pred_check_branch
      %24 = sbr.rel (0) target = $region9
    $region8: #{tpu_custom_call.1} parent=1 // pred_region
      %s26 = ssub.s32 512, 512
      %27 = vsyncadd [#allocation6], %s26
      %s28 = sshll.u32 [#allocation5], 4
      %s29 = int_to_ptr.vmem [resolvable:$true] %s28
      %34 = dma.hbm_to_vmem [thread:$0]  %s1, 512, %s29, [#allocation6], 128, 128, 8
    $region9: #{tpu_custom_call.1} parent=1 // pred_fallthru
      _
    // Predicated region
    $region10: #{tpu_custom_call.1} parent=1 // pred_check
      _
    $region11: #{tpu_custom_call.1} parent=1 // pred_check_branch
      %36 = sbr.rel (0) target = $region13
    $region12: #{tpu_custom_call.1} parent=1 // pred_region
      _
    $region13: #{tpu_custom_call.1} parent=1 // pred_fallthru
      _
    // Predicated region
    $region14: #{tpu_custom_call.1} parent=1 // pred_check
      _
    $region15: #{tpu_custom_call.1} parent=1 // pred_check_branch
      %38 = sbr.rel (0) target = $region17
    $region16: #{tpu_custom_call.1} parent=1 // pred_region
      %s40 = ssub.s32 1024, 1024
      %41 = vsyncadd [#allocation6], %s40
      %s42 = sshll.u32 [#allocation7], 4
      %s43 = int_to_ptr.vmem [resolvable:$true] %s42
      %48 = dma.hbm_to_vmem [thread:$0]  %s3, 1024, %s43, [#allocation6], 128, 128, 8
    $region17: #{tpu_custom_call.1} parent=1 // pred_fallthru
      _
    // Predicated region
    $region18: #{tpu_custom_call.1} parent=1 // pred_check
      _
    $region19: #{tpu_custom_call.1} parent=1 // pred_check_branch
      %50 = sbr.rel (0) target = $region21
    $region20: #{tpu_custom_call.1} parent=1 // pred_region
      _
    $region21: #{tpu_custom_call.1} parent=1 // pred_fallthru
      _
    // Predicated region
    $region22: #{tpu_custom_call.1} parent=1 // pred_check
      _
    $region23: #{tpu_custom_call.1} parent=1 // pred_check_branch
      %52 = sbr.rel (0) target = $region25
    $region24: #{tpu_custom_call.1} parent=1 // pred_region
      %53 = dma.done [#allocation3], 128
    $region25: #{tpu_custom_call.1} parent=1 // pred_fallthru
      _
    // Predicated region
    $region26: #{tpu_custom_call.1} parent=1 // pred_check
      _
    $region27: #{tpu_custom_call.1} parent=1 // pred_check_branch
      %55 = sbr.rel (0) target = $region29
    $region28: #{tpu_custom_call.1} parent=1 // pred_region
      %56 = dma.done [#allocation6], 512
    $region29: #{tpu_custom_call.1} parent=1 // pred_fallthru
      _
    // Predicated region
    $region30: #{tpu_custom_call.1} parent=1 // pred_check
      _
    $region31: #{tpu_custom_call.1} parent=1 // pred_check_branch
      %58 = sbr.rel (0) target = $region33
    $region32: #{tpu_custom_call.1} parent=1 // pred_region
      %59 = dma.done [#allocation6], 1024
    $region33: #{tpu_custom_call.1} parent=1 // pred_fallthru
      _
    %v60 = vld [vmem:[#allocation2] sm:$0xff]
    %v61 = vld [vmem:[#allocation5] sm:$0xff]
    %v62 = vld [vmem:[#allocation5 + $0x8] sm:$0xff]
    %v63 = vld [vmem:[#allocation5 + $0x10] sm:$0xff]
    %v64 = vld [vmem:[#allocation5 + $0x18] sm:$0xff]
    %v65 = vld [vmem:[%s2] sm:$0x1]
    %v67 = vlaneseq
    %v68 = vshrl.u32 %v67, 7
    %v69 = vsub.s32 0, %v68
    %v70 = vrot.slane %v65, %v69
    %vm72 = vcmask 261120
    %v74 = vsel %vm72, %v60, 0
    %76 = vmatprep.subr.mxu0 0.0
    %77 = vmatpush1.msra.mxu0 %v61
    %78 = vmatprep.subr.mxu0 0.0
    %79 = vmatpush1.msra.mxu0 %v62
    %80 = vmatprep.subr.mxu0 0.0
    %81 = vmatpush1.msra.mxu0 %v63
    %82 = vmatprep.subr.mxu0 0.0
    %83 = vmatpush1.msra.mxu0 %v64
    %84 = vmatprep.subr.mxu0 0.0
    %85 = vmatpush1.msra.mxu0 0.0
    %86 = vmatprep.subr.mxu0 0.0
    %87 = vmatpush1.msra.mxu0 0.0
    %88 = vmatprep.subr.mxu0 0.0
    %89 = vmatpush1.msra.mxu0 0.0
    %90 = vmatprep.subr.mxu0 0.0
    %91 = vmatpush1.msra.mxu0 0.0
    %92 = vmatprep.subr.mxu0 0.0
    %93 = vmatpush1.msra.mxu0 0.0
    %94 = vmatprep.subr.mxu0 0.0
    %95 = vmatpush1.msra.mxu0 0.0
    %96 = vmatprep.subr.mxu0 0.0
    %97 = vmatpush1.msra.mxu0 0.0
    %98 = vmatprep.subr.mxu0 0.0
    %99 = vmatpush1.msra.mxu0 0.0
    %100 = vmatprep.subr.mxu0 0.0
    %101 = vmatpush1.msra.mxu0 0.0
    %102 = vmatprep.subr.mxu0 0.0
    %103 = vmatpush1.msra.mxu0 0.0
    %104 = vmatprep.subr.mxu0 0.0
    %105 = vmatpush1.msra.mxu0 0.0
    %106 = vmatprep.subr.mxu0 0.0
    %107 = vmatpush1.msra.mxu0 0.0
    %108 = vmatprep.subr.mxu0 0.0
    %109 = vmatpush1.msra.mxu0 0.0
    %110 = vmatprep.subr.mxu0 0.0
    %111 = vmatpush1.msra.mxu0 0.0
    %112 = vmatprep.subr.mxu0 0.0
    %113 = vmatpush1.msra.mxu0 0.0
    %114 = vmatprep.subr.mxu0 0.0
    %115 = vmatpush1.msra.mxu0 0.0
    %116 = vmatprep.subr.mxu0 0.0
    %117 = vmatpush1.msra.mxu0 0.0
    %118 = vmatprep.subr.mxu0 0.0
    %119 = vmatpush1.msra.mxu0 0.0
    %120 = vmatprep.subr.mxu0 0.0
    %121 = vmatpush1.msra.mxu0 0.0
    %122 = vmatprep.subr.mxu0 0.0
    %123 = vmatpush1.msra.mxu0 0.0
    %124 = vmatprep.subr.mxu0 0.0
    %125 = vmatpush1.msra.mxu0 0.0
    %126 = vmatprep.subr.mxu0 0.0
    %127 = vmatpush1.msra.mxu0 0.0
    %128 = vmatprep.subr.mxu0 0.0
    %129 = vmatpush1.msra.mxu0 0.0
    %130 = vmatprep.subr.mxu0 0.0
    %131 = vmatpush1.msra.mxu0 0.0
    %132 = vmatprep.subr.mxu0 0.0
    %133 = vmatpush1.msra.mxu0 0.0
    %134 = vmatprep.subr.mxu0 0.0
    %135 = vmatpush1.msra.mxu0 0.0
    %136 = vmatprep.subr.mxu0 0.0
    %137 = vmatpush1.msra.mxu0 0.0
    %138 = vmatprep.subr.mxu0 0.0
    %139 = vmatpush1.msra.mxu0 0.0
    %140 = vmatprep.mubr.f32.mxu0 0.0
    %141 = vmatmul.mubr.f32.gmra.mrb[0].mxu0 %v74
    %v142 = vpop.f32.mrb[0].mxu0
    %v143 = vadd.f32 %v70, %v142
    %v144 = vpop.f32.mrb[0].mxu0
    %145 = vdwg.mxu0
    %v146 = vmul.f32 %v143, 0.01
    %v147 = vmax.f32 %v143, %v146
    %v148 = vld [vmem:[#allocation7] sm:$0xff]
    %v149 = vld [vmem:[#allocation7 + $0x8] sm:$0xff]
    %v150 = vld [vmem:[#allocation7 + $0x10] sm:$0xff]
    %v151 = vld [vmem:[#allocation7 + $0x18] sm:$0xff]
    %v152 = vld [vmem:[#allocation7 + $0x20] sm:$0xff]
    %v153 = vld [vmem:[#allocation7 + $0x28] sm:$0xff]
    %v154 = vld [vmem:[#allocation7 + $0x30] sm:$0xff]
    %v155 = vld [vmem:[#allocation7 + $0x38] sm:$0xff]
    %v156 = vld [vmem:[%s4] sm:$0x1]
    %v158 = vlaneseq
    %v159 = vshrl.u32 %v158, 7
    %v160 = vsub.s32 0, %v159
    %v161 = vrot.slane %v156, %v160
    %vm163 = vcmask 523264
    %v165 = vsel %vm163, %v147, 0
    %167 = vmatprep.subr.mxu0 0.0
    %168 = vmatpush1.msra.mxu0 %v148
    %169 = vmatprep.subr.mxu0 0.0
    %170 = vmatpush1.msra.mxu0 %v149
    %171 = vmatprep.subr.mxu0 0.0
    %172 = vmatpush1.msra.mxu0 %v150
    %173 = vmatprep.subr.mxu0 0.0
    %174 = vmatpush1.msra.mxu0 %v151
    %175 = vmatprep.subr.mxu0 0.0
    %176 = vmatpush1.msra.mxu0 %v152
    %177 = vmatprep.subr.mxu0 0.0
    %178 = vmatpush1.msra.mxu0 %v153
    %179 = vmatprep.subr.mxu0 0.0
    %180 = vmatpush1.msra.mxu0 %v154
    %181 = vmatprep.subr.mxu0 0.0
    %182 = vmatpush1.msra.mxu0 %v155
    %183 = vmatprep.subr.mxu0 0.0
    %184 = vmatpush1.msra.mxu0 0.0
    %185 = vmatprep.subr.mxu0 0.0
    %186 = vmatpush1.msra.mxu0 0.0
    %187 = vmatprep.subr.mxu0 0.0
    %188 = vmatpush1.msra.mxu0 0.0
    %189 = vmatprep.subr.mxu0 0.0
    %190 = vmatpush1.msra.mxu0 0.0
    %191 = vmatprep.subr.mxu0 0.0
    %192 = vmatpush1.msra.mxu0 0.0
    %193 = vmatprep.subr.mxu0 0.0
    %194 = vmatpush1.msra.mxu0 0.0
    %195 = vmatprep.subr.mxu0 0.0
    %196 = vmatpush1.msra.mxu0 0.0
    %197 = vmatprep.subr.mxu0 0.0
    %198 = vmatpush1.msra.mxu0 0.0
    %199 = vmatprep.subr.mxu0 0.0
    %200 = vmatpush1.msra.mxu0 0.0
    %201 = vmatprep.subr.mxu0 0.0
    %202 = vmatpush1.msra.mxu0 0.0
    %203 = vmatprep.subr.mxu0 0.0
    %204 = vmatpush1.msra.mxu0 0.0
    %205 = vmatprep.subr.mxu0 0.0
    %206 = vmatpush1.msra.mxu0 0.0
    %207 = vmatprep.subr.mxu0 0.0
    %208 = vmatpush1.msra.mxu0 0.0
    %209 = vmatprep.subr.mxu0 0.0
    %210 = vmatpush1.msra.mxu0 0.0
    %211 = vmatprep.subr.mxu0 0.0
    %212 = vmatpush1.msra.mxu0 0.0
    %213 = vmatprep.subr.mxu0 0.0
    %214 = vmatpush1.msra.mxu0 0.0
    %215 = vmatprep.subr.mxu0 0.0
    %216 = vmatpush1.msra.mxu0 0.0
    %217 = vmatprep.subr.mxu0 0.0
    %218 = vmatpush1.msra.mxu0 0.0
    %219 = vmatprep.subr.mxu0 0.0
    %220 = vmatpush1.msra.mxu0 0.0
    %221 = vmatprep.subr.mxu0 0.0
    %222 = vmatpush1.msra.mxu0 0.0
    %223 = vmatprep.subr.mxu0 0.0
    %224 = vmatpush1.msra.mxu0 0.0
    %225 = vmatprep.subr.mxu0 0.0
    %226 = vmatpush1.msra.mxu0 0.0
    %227 = vmatprep.subr.mxu0 0.0
    %228 = vmatpush1.msra.mxu0 0.0
    %229 = vmatprep.subr.mxu0 0.0
    %230 = vmatpush1.msra.mxu0 0.0
    %231 = vmatprep.mubr.f32.mxu0 0.0
    %232 = vmatmul.mubr.f32.gmra.mrb[0].mxu0 %v165
    %v233 = vpop.f32.mrb[0].mxu0
    %v234 = vadd.f32 %v161, %v233
    %v235 = vpop.f32.mrb[0].mxu0
    %236 = vdwg.mxu0
    %v237 = vrot.slane %v234, 4
    %v238 = vmax.f32 %v234, %v237
    %v239 = vrot.slane %v238, 2
    %v240 = vmax.f32 %v238, %v239
    %v241 = vrot.slane %v240, 1
    %v242 = vmax.f32 %v240, %v241
    %v243 = vsub.f32 %v234, %v242
    %v244 = vmul.f32 %v243, 1.442695
    %v245 = vpow.pop %v244
    %v246 = vrot.slane %v245, 4
    %v247 = vadd.f32 %v245, %v246
    %v248 = vrot.slane %v247, 2
    %v249 = vadd.f32 %v247, %v248
    %v250 = vrot.slane %v249, 1
    %v251 = vadd.f32 %v249, %v250
    %v252 = vrcp.pop %v251
    %v253 = vmul.f32 %v251, %v252
    %v254 = vsub.f32 2.0, %v253
    %v255 = vmul.f32 %v252, %v254
    %v256 = vmul.f32 %v245, %v255
    %257 = vst [vmem:[#allocation8] sm:$0xff] %v256
    // Predicated region
    $region34: #{tpu_custom_call.1} parent=1 // pred_check
      _
    $region35: #{tpu_custom_call.1} parent=1 // pred_check_branch
      %259 = sbr.rel (0) target = $region37
    $region36: #{tpu_custom_call.1} parent=1 // pred_region
      %s261 = ssub.s32 128, 128
      %262 = vsyncadd [#allocation4], %s261
      %s264 = sshll.u32 [#allocation8], 4
      %s265 = int_to_ptr.vmem [resolvable:$true] %s264
      %267 = dma.vmem_to_hbm [thread:$0]  %s265, 128, %s5, [#allocation4]
    $region37: #{tpu_custom_call.1} parent=1 // pred_fallthru
      _
    // Predicated region
    $region38: #{tpu_custom_call.1} parent=1 // pred_check
      _
    $region39: #{tpu_custom_call.1} parent=1 // pred_check_branch
      %269 = sbr.rel (0) target = $region41
    $region40: #{tpu_custom_call.1} parent=1 // pred_region
      %270 = dma.done [#allocation4], 128
    $region41: #{tpu_custom_call.1} parent=1 // pred_fallthru
      _
    %271 = vsyncpa [#allocation3], 1
    %272 = vsyncpa [#allocation6], 1
    %273 = vsyncpa [#allocation4], 1

</llo_original>
